<compile_context>
chip_gen: v5e
topology: v5e:2x2
jax: 0.10.0
libtpu: 0.0.40
codegen_flags: <defaults>
</compile_context>

<pallas_src>
import functools

import jax
import jax.numpy as jnp
from jax import lax
from jax.experimental import pallas as pl
from jax.experimental.pallas import tpu as pltpu


def _tv_kernel(x_ref, out_ref, *, w: int, hw_valid: int, hw_pad: int, pow2_w: bool):
    """x_ref: (1, C, HW_pad) VMEM tile; out_ref: (1, HW_pad) lane-dense partials."""
    x = x_ref[0].astype(jnp.float32)                       # (C, HW_pad)

    # Left neighbour  x_left[i] = x[i-1]  and up neighbour  x_up[i] = x[i-w].
    # pltpu.roll matches jnp.roll semantics; axis must be a non-negative index.
    x_left = pltpu.roll(x, shift=1, axis=1)
    x_up = pltpu.roll(x, shift=w, axis=1)

    col = lax.broadcasted_iota(jnp.int32, x.shape, 1)      # flattened spatial index
    zero = jnp.float32(0.0)

    # Horizontal diffs |x[r,c] - x[r,c-1]| valid for c in [1, w) (exclude the
    # column-0 wrap of the roll).
    if pow2_w:
        mask_h = (col & (w - 1)) != 0
    else:
        mask_h = (col % w) != 0
    # Vertical diffs |x[r,c] - x[r-1,c]| valid for flattened index >= w.
    mask_v = col >= w
    if hw_valid != hw_pad:                                  # ignore lane padding
        live = col < hw_valid
        mask_h = jnp.logical_and(mask_h, live)
        mask_v = jnp.logical_and(mask_v, live)

    d_h = jnp.where(mask_h, jnp.abs(x - x_left), zero)
    d_v = jnp.where(mask_v, jnp.abs(x - x_up), zero)

    # Reduce only the cheap channel (sublane) axis in-kernel; keep the output
    # lane-dense so the store is a full-width unmasked vst.
    out_ref[...] = jnp.sum(d_h + d_v, axis=0, keepdims=True)


def heatmap_smoothness_loss(image: jax.Array) -> jax.Array:
    """image: (B, C, H, W). Returns a scalar float32 loss."""
    B, C, H, W = image.shape
    HW = H * W
    HW_pad = max(128, ((HW + 127) // 128) * 128)           # lane-align the spatial axis

    x = image.reshape(B, C, HW)
    if HW_pad != HW:
        x = jnp.pad(x, ((0, 0), (0, 0), (0, HW_pad - HW)))

    itemsize = jnp.dtype(image.dtype).itemsize
    block_bytes = C * HW_pad * itemsize
    # Double-buffered input + headroom; lift v5e's 16 MiB default scoped limit
    # when blocks grow, but stay well inside v7x's 64 MiB physical VMEM.
    vmem_limit = int(min(max(4 * block_bytes + (2 << 20), 16 << 20), 48 << 20))
    # NOTE: if C*H*W ever grows past ~10 MiB per block, split C over an extra
    # "parallel" grid axis — the in-kernel masks make channel chunks exactly
    # independent, so the result is unchanged.

    partials = pl.pallas_call(
        functools.partial(
            _tv_kernel,
            w=W,
            hw_valid=HW,
            hw_pad=HW_pad,
            pow2_w=(W & (W - 1)) == 0,
        ),
        out_shape=jax.ShapeDtypeStruct((1, B * HW_pad), jnp.float32),
        grid_spec=pltpu.PrefetchScalarGridSpec(
            num_scalar_prefetch=0,
            grid=(B,),
            in_specs=[
                pl.BlockSpec((1, C, HW_pad), lambda b: (b, 0, 0)),
            ],
            out_specs=pl.BlockSpec((1, HW_pad), lambda b: (0, b)),
        ),
        compiler_params=pltpu.CompilerParams(
            dimension_semantics=("parallel",),
            vmem_limit_bytes=vmem_limit,
        ),
        cost_estimate=pl.CostEstimate(
            flops=10 * B * C * HW_pad,
            transcendentals=0,
            bytes_accessed=B * C * HW_pad * itemsize + B * HW_pad * 4,
        ),
    )(x)

    # Masked positions contribute exactly zero, so a plain sum recovers the total.
    norm = jnp.float32(W * H * B)  # matches the PyTorch module (no C in the norm)
    return (jnp.sum(partials) / norm).astype(jnp.float32)


def _reference(image: jax.Array) -> jax.Array:
    """Pure-JAX reference mirroring the PyTorch forward."""
    x = image.astype(jnp.float32)
    diff_i = jnp.abs(x[:, :, :, :-1] - x[:, :, :, 1:])
    diff_j = jnp.abs(x[:, :, :-1, :] - x[:, :, 1:, :])
    B, _, H, W = image.shape
    return (jnp.sum(diff_i) + jnp.sum(diff_j)) / (W * H * B)


if __name__ == "__main__":
    key = jax.random.PRNGKey(0)
    B, C, H, W = 2, 4, 16, 16
    image = jax.random.normal(key, (B, C, H, W), dtype=jnp.float32)

    loss = heatmap_smoothness_loss(image)
    jax.block_until_ready(loss)

    ref = _reference(image)
    assert jnp.allclose(loss, ref, rtol=1e-5, atol=1e-5), (loss, ref)

    print("KERNEL_OK")
</pallas_src>

<mosaic_0001>
module attributes {stable_mosaic.version = 11 : i64} {
  func.func @_tv_kernel(%arg0: i32, %arg1: memref<1x4x256xf32, #tpu.memory_space<vmem>>, %arg2: memref<1x256xf32, #tpu.memory_space<vmem>>) attributes {dimension_semantics = [#tpu.dimension_semantics<parallel>], iteration_bounds = array<i64: 2>, scalar_prefetch = 0 : i64, scratch_operands = 0 : i64, tpu.core_type = #tpu.core_type<tc>, window_params = [{transform_indices = @transform_0, window_bounds = array<i64: 1, 4, 256>}, {transform_indices = @transform_1, window_bounds = array<i64: 1, 256>}]} {
    %c0 = arith.constant 0 : index
    %c0_0 = arith.constant 0 : index
    %c0_1 = arith.constant 0 : index
    %0 = vector.load %arg1[%c0, %c0_0, %c0_1] : memref<1x4x256xf32, #tpu.memory_space<vmem>>, vector<1x4x256xf32>
    %1 = vector.shape_cast %0 : vector<1x4x256xf32> to vector<4x256xf32>
    %c1_i32 = arith.constant 1 : i32
    %2 = tpu.dynamic_rotate %1 by %c1_i32 dim 1 : vector<4x256xf32>, i32 -> vector<4x256xf32>
    %c16_i32 = arith.constant 16 : i32
    %3 = tpu.dynamic_rotate %1 by %c16_i32 dim 1 : vector<4x256xf32>, i32 -> vector<4x256xf32>
    %4 = tpu.iota {dimensions = array<i32: 1>} : vector<4x256xi32>
    %c15_i32 = arith.constant 15 : i32
    %5 = vector.broadcast %c15_i32 : i32 to vector<4x256xi32>
    %6 = arith.andi %4, %5 : vector<4x256xi32>
    %c0_i32 = arith.constant 0 : i32
    %7 = vector.broadcast %c0_i32 : i32 to vector<4x256xi32>
    %8 = arith.cmpi ne, %6, %7 : vector<4x256xi32>
    %c16_i32_2 = arith.constant 16 : i32
    %9 = vector.broadcast %c16_i32_2 : i32 to vector<4x256xi32>
    %10 = arith.cmpi sge, %4, %9 : vector<4x256xi32>
    %11 = arith.subf %1, %2 : vector<4x256xf32>
    %12 = math.absf %11 : vector<4x256xf32>
    %cst = arith.constant 0.000000e+00 : f32
    %13 = vector.broadcast %cst : f32 to vector<4x256xf32>
    %14 = arith.select %8, %12, %13 : vector<4x256xi1>, vector<4x256xf32>
    %15 = arith.subf %1, %3 : vector<4x256xf32>
    %16 = math.absf %15 : vector<4x256xf32>
    %cst_3 = arith.constant 0.000000e+00 : f32
    %17 = vector.broadcast %cst_3 : f32 to vector<4x256xf32>
    %18 = arith.select %10, %16, %17 : vector<4x256xi1>, vector<4x256xf32>
    %19 = arith.addf %14, %18 : vector<4x256xf32>
    %cst_4 = arith.constant dense<0.000000e+00> : vector<256xf32>
    %20 = vector.multi_reduction <add>, %19, %cst_4 [0] : vector<4x256xf32> to vector<256xf32>
    %21 = vector.shape_cast %20 : vector<256xf32> to vector<1x256xf32>
    %c0_5 = arith.constant 0 : index
    %c0_6 = arith.constant 0 : index
    %22 = vector.load %arg2[%c0_5, %c0_6] : memref<1x256xf32, #tpu.memory_space<vmem>>, vector<1x256xf32>
    tpu.vector_store %arg2[%c0_5, %c0_6], %21 {strides = array<i32>} : memref<1x256xf32, #tpu.memory_space<vmem>>, vector<1x256xf32>,
    return
  }
  func.func @transform_0(%arg0: i32) -> (i32, i32, i32) {
    %c0_i32 = arith.constant 0 : i32
    %c0_i32_0 = arith.constant 0 : i32
    %c0_i32_1 = arith.constant 0 : i32
    return %arg0, %c0_i32, %c0_i32_0 : i32, i32, i32
  }
  func.func @transform_1(%arg0: i32) -> (i32, i32) {
    %c0_i32 = arith.constant 0 : i32
    %c0_i32_0 = arith.constant 0 : i32
    return %c0_i32, %arg0 : i32, i32
  }
}

</mosaic_0001>

<llo_original>
// kernel: tpu_custom_call.1
$region0: #{tpu_custom_call.1}
  #allocation0 [shape = 'u32[]', space=smem, size = 0x4, offset = 0x4, fixed_abs, tag = 'smem constant byte address 0x4 - core index']
  #allocation1 [shape = 'u32[72,128]{1,0:T(1,128)}', space=vmem, size = 0x9000, scoped, tag = 'internal scratch']
  %s0 = inlined_call_operand.hbm [shape: f32[2,4,256], index: 0, kind: input, shape index: {}]
  %s1 = inlined_call_operand.hbm [shape: f32[1,512], index: 1, kind: output, shape index: {}]
  %s2 = sld [smem:[#allocation0]]
  $region41: #{tpu_custom_call.1} parent=0
    _
  %s4 = ssub.s32 1, %s2
  %s5 = scalar_select 0, %s4, %s2
  $region1: #{tpu_custom_call.1} parent=0
    #allocation2 [shape = 'u8[8192]{0}', space=vmem, size = 0x2000, scoped, tag = 'input window, operand 0']
    #allocation3 [shape = 's32[2]{0}', space=sflag, size = 0x8, scoped, tag = 'scoped memory for tpu_custom_call.1']
    #allocation4 [shape = 's32[2]{0}', space=sflag, size = 0x8, scoped, tag = 'scoped memory for tpu_custom_call.1']
    #allocation5 [shape = 'u8[2048]{0}', space=vmem, size = 0x800, scoped, tag = 'output window, operand 0']
    %6 = vsyncpa [#allocation3], 0
    %s7 = scalar_lea.sflag [#allocation3], 1
    %8 = vsyncpa %s7, 0
    %9 = vsyncpa [#allocation4], 0
    %s10 = scalar_lea.sflag [#allocation4], 1
    %11 = vsyncpa %s10, 0
    loop: start=0, step=1, limit=4
    $region2: #{tpu_custom_call.1} parent=1 // loop_pre_header
      _
    $region3: #{tpu_custom_call.1} parent=1 // loop_header
      %s13 = sphi 0, %s17
      %p14 = scmp.ge.s32.totalorder %s13, 4
      %s23 = sphi 0, %s25
      %s26 = sphi 0, %s23
      %s27 = sphi 0, %s26
      %s43 = sphi 0, %s27
      %s49 = sphi 0, %s51
      %s52 = sphi 0, %s49
      %s53 = sphi 0, %s52
      %s69 = sphi 0, %s53
    $region4: #{tpu_custom_call.1} parent=1 // loop_header_branch
      %16 = sbr.rel (%p14) target = $region8
    $region5: #{tpu_custom_call.1} parent=1 // loop_body
      %s18 = ssub.s32 %s13, 1
      %s19 = ssub.s32 %s13, 2
      %s20 = sadd.s32 %s13, 1
      %s21 = ssub.s32 %s13, %s20
      %p22 = scmp.eq.s32.totalorder %s21, 0
      %s24 = sadd.s32 %s23, 1
      %s25 = scalar_select %p22, %s23, %s24
      %p28 = pneg %p22
      %p29 = scmp.eq.s32.totalorder %s13, 1
      %p30 = por %p28, %p29
      %p31 = scmp.ne.s32.totalorder %s23, %s26
      %p32 = scmp.eq.s32.totalorder %s13, 0
      %p33 = por %p31, %p32
      %p34 = scmp.ne.s32.totalorder %s23, %s26
      %p35 = scmp.eq.s32.totalorder %s18, 1
      %p36 = por %p34, %p35
      %p37 = scmp.ne.s32.totalorder %s26, %s27
      %p38 = scmp.eq.s32.totalorder %s18, 0
      %p39 = por %p37, %p38
      %p40 = scmp.ne.s32.totalorder %s26, %s27
      %p41 = scmp.eq.s32.totalorder %s19, 1
      %p42 = por %p40, %p41
      %p44 = scmp.ne.s32.totalorder %s27, %s43
      %p45 = scmp.eq.s32.totalorder %s19, 0
      %p46 = por %p44, %p45
      %s47 = ssub.s32 %s13, %s20
      %p48 = scmp.eq.s32.totalorder %s47, 0
      %s50 = sadd.s32 %s49, 1
      %s51 = scalar_select %p48, %s49, %s50
      %p54 = pneg %p48
      %p55 = scmp.eq.s32.totalorder %s13, 1
      %p56 = por %p54, %p55
      %p57 = scmp.ne.s32.totalorder %s49, %s52
      %p58 = scmp.eq.s32.totalorder %s13, 0
      %p59 = por %p57, %p58
      %p60 = scmp.ne.s32.totalorder %s49, %s52
      %p61 = scmp.eq.s32.totalorder %s18, 1
      %p62 = por %p60, %p61
      %p63 = scmp.ne.s32.totalorder %s52, %s53
      %p64 = scmp.eq.s32.totalorder %s18, 0
      %p65 = por %p63, %p64
      %p66 = scmp.ne.s32.totalorder %s52, %s53
      %p67 = scmp.eq.s32.totalorder %s19, 1
      %p68 = por %p66, %p67
      %p70 = scmp.ne.s32.totalorder %s53, %s69
      %p71 = scmp.eq.s32.totalorder %s19, 0
      %p72 = por %p70, %p71
      %p73 = scmp.le.s32.totalorder 1, %s13
      %p74 = scmp.lt.s32.totalorder %s13, 3
      %p75 = pnand %p73, %p74
      %p76 = pneg %p75
      // Predicated region
      $region9: #{tpu_custom_call.1} parent=5 // pred_check
        _
      $region10: #{tpu_custom_call.1} parent=5 // pred_check_branch
        %78 = sbr.rel (%p75) target = $region12
      $region11: #{tpu_custom_call.1} parent=5 // pred_region
        %s79 = ssub.s32 %s13, 1
      $region12: #{tpu_custom_call.1} parent=5 // pred_fallthru
        _
      %p80 = scmp.lt.s32.totalorder %s13, 2
      // Predicated region
      $region13: #{tpu_custom_call.1} parent=5 // pred_check
        %p81 = pneg %p80
      $region14: #{tpu_custom_call.1} parent=5 // pred_check_branch
        %83 = sbr.rel (%p81) target = $region16
      $region15: #{tpu_custom_call.1} parent=5 // pred_region
        // Predicated region
        $region17: #{tpu_custom_call.1} parent=15 // pred_check
          %p84 = pneg %p33
        $region18: #{tpu_custom_call.1} parent=15 // pred_check_branch
          %86 = sbr.rel (%p84) target = $region20
        $region19: #{tpu_custom_call.1} parent=15 // pred_region
          %s87 = sand.u32 %s23, 1
          %s88 = scalar_lea.sflag [#allocation3], %s87
          %s89 = sand.u32 %s23, 1
          %s90 = smul.addr %s89, 8
          %s91 = scalar_lea.vmem [#allocation2], %s90
          %93 = vsyncadd %s88, 0
          %s94 = smul.addr %s13, 2
          %s95 = smul.addr %s94, 4
          %s96 = scalar_lea.hbm %s0, %s95
          %s98 = sshll.u32 %s96, 4
          %s99 = int_to_ptr.hbm [resolvable:$true] %s98
          %s100 = sshll.u32 %s91, 4
          %s101 = int_to_ptr.vmem [resolvable:$true] %s100
          %103 = dma.hbm_to_vmem [thread:$0]  %s99, 128, %s101, %s88
        $region20: #{tpu_custom_call.1} parent=15 // pred_fallthru
          _
      $region16: #{tpu_custom_call.1} parent=5 // pred_fallthru
        _
      %p104 = scmp.le.s32.totalorder 1, %s13
      %p105 = scmp.lt.s32.totalorder %s13, 3
      %p106 = pnand %p104, %p105
      %p107 = pneg %p106
      // Predicated region
      $region21: #{tpu_custom_call.1} parent=5 // pred_check
        _
      $region22: #{tpu_custom_call.1} parent=5 // pred_check_branch
        %109 = sbr.rel (%p106) target = $region24
      $region23: #{tpu_custom_call.1} parent=5 // pred_region
        %s110 = ssub.s32 %s13, 1
        %s111 = sand.u32 %s26, 1
        %s112 = scalar_lea.sflag [#allocation3], %s111
        %s113 = sand.u32 %s26, 1
        %s114 = smul.addr %s113, 8
        %s115 = scalar_lea.vmem [#allocation2], %s114
        // Predicated region
        $region25: #{tpu_custom_call.1} parent=23 // pred_check
          %p116 = pneg %p39
        $region26: #{tpu_custom_call.1} parent=23 // pred_check_branch
          %118 = sbr.rel (%p116) target = $region28
        $region27: #{tpu_custom_call.1} parent=23 // pred_region
          %120 = dma.done %s112, 128
        $region28: #{tpu_custom_call.1} parent=23 // pred_fallthru
          _
        %s121 = sand.u32 %s26, 1
        %s122 = scalar_lea.sflag [#allocation3], %s121
        %s123 = sand.u32 %s26, 1
        %s124 = smul.addr %s123, 8
        %s125 = scalar_lea.vmem [#allocation2], %s124
        %p126 = pneg %p39
        %p127 = pneg %p36
        %p128 = pneg %p65
        %p129 = pneg %p62
        %s130 = sand.u32 %s52, 1
        %s131 = scalar_lea.sflag [#allocation4], %s130
        %s132 = sand.u32 %s52, 1
        %s133 = smul.addr %s132, 2
        %s134 = scalar_lea.vmem [#allocation5], %s133
        %s135 = smul.u32 2, %s18
        %v136 = vld [vmem:[%s115] sm:$0xff]
        %138 = vst [vmem:[#allocation1] ss:$2 sm:$0xff] %v136
        %v139 = vld.sshfl [vmem:[#allocation1] sm:$0xff pattern:$0x75316420]
        %v140 = vld.sshfl [vmem:[#allocation1 + $0x8] sm:$0xff pattern:$0x75316420]
        %143 = vrot.lane.b32.xlu0 %v139, 1
        %v144 = vpop.permute.xlu0 %143
        %145 = vrot.lane.b32.xlu0 %v140, 1
        %v146 = vpop.permute.xlu0 %145
        %v147 = vlaneseq
        %v148 = vand.u32 %v147, 127
        %vm149 = vcmp.lt.s32.totalorder %v148, 1
        %v150 = vsel %vm149, %v144, %v146
        %v151 = vsel %vm149, %v146, %v144
        %152 = vst [vmem:[#allocation1] ss:$2 sm:$0xff] %v136
        %v153 = vld.sshfl [vmem:[#allocation1] sm:$0xff pattern:$0x75316420]
        %v154 = vld.sshfl [vmem:[#allocation1 + $0x8] sm:$0xff pattern:$0x75316420]
        %157 = vrot.lane.b32.xlu0 %v153, 16
        %v158 = vpop.permute.xlu0 %157
        %159 = vrot.lane.b32.xlu0 %v154, 16
        %v160 = vpop.permute.xlu0 %159
        %vm161 = vcmp.lt.s32.totalorder %v148, 16
        %v162 = vsel %vm161, %v158, %v160
        %v163 = vsel %vm161, %v160, %v158
        %v164 = vadd.s32 %v148, 128
        %v165 = vand.u32 %v148, 15
        %v166 = vand.u32 %v164, 15
        %vm167 = vcmp.ne.s32.totalorder %v165, 0
        %vm168 = vcmp.ne.s32.totalorder %v166, 0
        %vm169 = vcmp.ge.s32.totalorder %v148, 16
        %vm170 = vcmp.ge.s32.totalorder %v164, 16
        %v173 = vrot.slane %v150, 4
        %vm174 = vcmask 1043456
        %v175 = vsel %vm174, %v151, %v173
        %v177 = vsub.f32 %v136, %v175
        %v178 = vand.u32 2147483647, %v177
        %180 = vst [vmem:[#allocation1] ss:$2 sm:$0xff] %v178
        %v181 = vld.sshfl [vmem:[#allocation1] sm:$0xff pattern:$0x75316420]
        %v182 = vld.sshfl [vmem:[#allocation1 + $0x8] sm:$0xff pattern:$0x75316420]
        %v185 = vsel %vm167, %v181, 0.0
        %v186 = vsel %vm168, %v182, 0.0
        %v189 = vrot.slane %v162, 4
        %v190 = vsel %vm174, %v163, %v189
        %v192 = vsub.f32 %v136, %v190
        %v193 = vand.u32 2147483647, %v192
        %195 = vst [vmem:[#allocation1] ss:$2 sm:$0xff] %v193
        %v196 = vld.sshfl [vmem:[#allocation1] sm:$0xff pattern:$0x75316420]
        %v197 = vld.sshfl [vmem:[#allocation1 + $0x8] sm:$0xff pattern:$0x75316420]
        %v200 = vsel %vm169, %v196, 0.0
        %v201 = vsel %vm170, %v197, 0.0
        %v202 = vadd.f32 %v185, %v200
        %v203 = vadd.f32 %v186, %v201
        %v204 = vsel %vm174, %v202, 0.0
        %v205 = vrot.slane %v204, 4
        %v206 = vadd.f32 %v204, %v205
        %v207 = vrot.slane %v206, 2
        %v208 = vadd.f32 %v206, %v207
        %v209 = vrot.slane %v208, 1
        %v210 = vadd.f32 %v208, %v209
        %v211 = vsel %vm174, %v203, 0.0
        %v212 = vrot.slane %v211, 4
        %v213 = vadd.f32 %v211, %v212
        %v214 = vrot.slane %v213, 2
        %v215 = vadd.f32 %v213, %v214
        %v216 = vrot.slane %v215, 1
        %v217 = vadd.f32 %v215, %v216
        %v220 = vrot.slane %v217, 7
        %vm221 = vcmask 1040384
        %v222 = vsel %vm221, %v210, %v220
        %v224 = vlaneseq
        %vm225 = vcmp.ge.s32.totalorder %v224, 0
        %vm226 = vcmp.lt.s32.totalorder %v224, 256
        %vm227 = vmand %vm225, %vm226
        %228 = vst.msk [vmem:[%s134] sm:$0x3] %vm227, %v222
        %s229 = sand.u32 %s52, 1
        %s230 = scalar_lea.sflag [#allocation4], %s229
        %s231 = sand.u32 %s52, 1
        %s232 = smul.addr %s231, 2
        %s233 = scalar_lea.vmem [#allocation5], %s232
        // Predicated region
        $region29: #{tpu_custom_call.1} parent=23 // pred_check
          %p234 = pneg %p62
        $region30: #{tpu_custom_call.1} parent=23 // pred_check_branch
          %236 = sbr.rel (%p234) target = $region32
        $region31: #{tpu_custom_call.1} parent=23 // pred_region
          %s237 = smul.u32 2, %s18
          %239 = vsyncadd %s230, 0
          %s240 = scalar_lea.hbm %s1, %s237
          %s242 = sshll.u32 %s233, 4
          %s243 = int_to_ptr.vmem [resolvable:$true] %s242
          %s244 = sshll.u32 %s240, 4
          %s245 = int_to_ptr.hbm [resolvable:$true] %s244
          %247 = dma.vmem_to_hbm [thread:$0]  %s243, 32, %s245, %s230
        $region32: #{tpu_custom_call.1} parent=23 // pred_fallthru
          _
      $region24: #{tpu_custom_call.1} parent=5 // pred_fallthru
        _
      %p248 = scmp.le.s32.totalorder 2, %s13
      // Predicated region
      $region33: #{tpu_custom_call.1} parent=5 // pred_check
        %p249 = pneg %p248
      $region34: #{tpu_custom_call.1} parent=5 // pred_check_branch
        %251 = sbr.rel (%p249) target = $region36
      $region35: #{tpu_custom_call.1} parent=5 // pred_region
        %s252 = ssub.s32 %s13, 2
        // Predicated region
        $region37: #{tpu_custom_call.1} parent=35 // pred_check
          %p253 = pneg %p68
        $region38: #{tpu_custom_call.1} parent=35 // pred_check_branch
          %255 = sbr.rel (%p253) target = $region40
        $region39: #{tpu_custom_call.1} parent=35 // pred_region
          %s256 = sand.u32 %s53, 1
          %s257 = scalar_lea.sflag [#allocation4], %s256
          %s258 = sand.u32 %s53, 1
          %s259 = smul.addr %s258, 2
          %s260 = scalar_lea.vmem [#allocation5], %s259
          %262 = dma.done %s257, 32
        $region40: #{tpu_custom_call.1} parent=35 // pred_fallthru
          _
      $region36: #{tpu_custom_call.1} parent=5 // pred_fallthru
        _
    $region6: #{tpu_custom_call.1} parent=1 // loop_footer
      %s17 = sadd.s32 1, %s13
    $region7: #{tpu_custom_call.1} parent=1 // loop_footer_branch
      %12 = sbr.rel target = $region3
    $region8: #{tpu_custom_call.1} parent=1 // loop_exit
      _
    %263 = vsyncpa [#allocation3], 1
    %s264 = scalar_lea.sflag [#allocation3], 1
    %265 = vsyncpa %s264, 1
    %266 = vsyncpa [#allocation4], 1
    %s267 = scalar_lea.sflag [#allocation4], 1
    %268 = vsyncpa %s267, 1

</llo_original>
